<compile_context>
chip_gen: v7x
topology: tpu7x:2x2x1
jax: 0.10.0
libtpu: 0.0.40
codegen_flags: <defaults>
</compile_context>

<pallas_src>
import jax
import jax.numpy as jnp
from jax.experimental import pallas as pl
from jax.experimental.pallas import tpu as pltpu

N_EMBD = 72
HIDDEN = 4 * N_EMBD   # 288
DROPOUT_P = 0.1       # unused in eval-mode forward

LANE = 128            # lane width (last-dim alignment)
TILE_M_DEFAULT = 2048 # rows per grid step (kept well under VMEM on all gens)


def _round_up(n, m):
    return ((n + m - 1) // m) * m


def _pad2(a, rows, cols):
    r, c = a.shape
    return jnp.pad(a, ((0, rows - r), (0, cols - c)))


def ffn_kernel(x_ref, w1_ref, b1_ref, w2_ref, b2_ref, o_ref):
    # x_ref : [TM, C=72]  f32   w1_ref: [C, Hp]  bf16   b1_ref: [1, Hp] f32
    # w2_ref: [Hp, Cp]    bf16  b2_ref: [1, Cp]  f32    o_ref : [TM, Cp] bf16
    x = x_ref[...].astype(w1_ref.dtype)          # single activation cast, in-kernel
    h = jnp.dot(x, w1_ref[...], preferred_element_type=jnp.float32)
    h = jnp.maximum(h + b1_ref[...], 0.0)        # bias + ReLU on f32 accumulator
    h = h.astype(w2_ref.dtype)                   # single cast feeding 2nd MXU pass
    y = jnp.dot(h, w2_ref[...], preferred_element_type=jnp.float32) + b2_ref[...]
    # Dropout in eval mode == identity.
    o_ref[...] = y.astype(o_ref.dtype)           # lane-dense bf16 store (Cp=128)


def prepare_params(w1, b1, w2, b2, *, param_dtype=jnp.bfloat16):
    """One-time padding/casting of weights & biases (hoisted out of per-call path)."""
    C, H = w1.shape
    assert w2.shape == (H, C)
    Cp = _round_up(C, LANE)   # 72  -> 128 (output lane width only)
    Hp = _round_up(H, LANE)   # 288 -> 384
    w1p = _pad2(w1, C, Hp).astype(param_dtype)            # keep K = 72 (no K pad)
    w2p = _pad2(w2, Hp, Cp).astype(param_dtype)
    b1p = _pad2(b1.reshape(1, H), 1, Hp).astype(jnp.float32)
    b2p = _pad2(b2.reshape(1, C), 1, Cp).astype(jnp.float32)
    return w1p, b1p, w2p, b2p


def feed_forward(x, params, *, tile_m=TILE_M_DEFAULT):
    """x: [B, T, C] float32, params from prepare_params -> [B, T, C] float32."""
    w1p, b1p, w2p, b2p = params
    B, T, C = x.shape
    Cin, Hp = w1p.shape
    Cp = w2p.shape[1]
    assert Cin == C
    M = B * T

    # Row-tile selection: big tiles for DMA efficiency, but keep >=2 grid steps
    # when M allows (v7x megacore), and shrink for tiny M.
    tile_m = min(tile_m, _round_up(M, 16))
    while tile_m > 128 and pl.cdiv(M, tile_m) < 2:
        tile_m //= 2
    Mp = _round_up(M, tile_m)

    # x stays f32 and un-padded in C; only row-pad when M doesn't divide tile_m.
    x2d = x.reshape(M, C)
    if Mp != M:
        x2d = jnp.pad(x2d, ((0, Mp - M), (0, 0)))

    flops = 2 * Mp * (C * Hp + Hp * Cp)
    bytes_accessed = (Mp * C * 4                       # x read (f32)
                      + w1p.size * 2 + w2p.size * 2    # weights (bf16)
                      + b1p.size * 4 + b2p.size * 4    # biases (f32)
                      + Mp * Cp * 2)                   # out write (bf16)

    # VMEM budget: double-buffered x/out tiles + f32/bf16 hidden + weights.
    vmem_bytes = (2 * tile_m * C * 4
                  + 2 * tile_m * Cp * 2
                  + tile_m * Hp * (4 + 2)
                  + C * Hp * 2 + Hp * Cp * 2
                  + (Hp + Cp) * 4)
    vmem_limit = min(max(int(vmem_bytes * 2), 8 * 1024 * 1024), 32 * 1024 * 1024)

    grid = (Mp // tile_m,)
    out2d = pl.pallas_call(
        ffn_kernel,
        out_shape=jax.ShapeDtypeStruct((Mp, Cp), jnp.bfloat16),
        grid=grid,
        in_specs=[
            pl.BlockSpec((tile_m, C), lambda i: (i, 0)),   # x tile, pipelined over M
            pl.BlockSpec((C, Hp), lambda i: (0, 0)),       # w1: VMEM-resident
            pl.BlockSpec((1, Hp), lambda i: (0, 0)),       # b1: VMEM-resident
            pl.BlockSpec((Hp, Cp), lambda i: (0, 0)),      # w2: VMEM-resident
            pl.BlockSpec((1, Cp), lambda i: (0, 0)),       # b2: VMEM-resident
        ],
        out_specs=pl.BlockSpec((tile_m, Cp), lambda i: (i, 0)),
        compiler_params=pltpu.CompilerParams(
            dimension_semantics=("parallel",),
            vmem_limit_bytes=vmem_limit),
        cost_estimate=pl.CostEstimate(flops=flops, transcendentals=0,
                                      bytes_accessed=bytes_accessed),
    )(x2d, w1p, b1p, w2p, b2p)

    # Cheap post-slice (72 cols, bf16) then cast back to f32 for the consumer.
    return out2d[:M, :C].astype(x.dtype).reshape(B, T, C)


def init_params(key, n_embd=N_EMBD):
    """Deterministic init mimicking nn.Linear's uniform(-1/sqrt(fan_in), +)."""
    k1, k2, k3, k4 = jax.random.split(key, 4)
    h = 4 * n_embd
    bound1 = 1.0 / jnp.sqrt(n_embd)
    bound2 = 1.0 / jnp.sqrt(h)
    # Stored transposed vs. PyTorch (we keep [in, out] so kernel does x @ W).
    w1 = jax.random.uniform(k1, (n_embd, h), jnp.float32, -bound1, bound1)
    b1 = jax.random.uniform(k2, (h,), jnp.float32, -bound1, bound1)
    w2 = jax.random.uniform(k3, (h, n_embd), jnp.float32, -bound2, bound2)
    b2 = jax.random.uniform(k4, (n_embd,), jnp.float32, -bound2, bound2)
    return w1, b1, w2, b2


if __name__ == "__main__":
    key = jax.random.PRNGKey(0)
    kx, kp = jax.random.split(key)

    B, T, C = 2, 8, N_EMBD
    x = jax.random.normal(kx, (B, T, C), jnp.float32)
    w1, b1, w2, b2 = init_params(kp)

    params = prepare_params(w1, b1, w2, b2)      # hoisted: done once, not per call
    out = feed_forward(x, params)
    out = jax.block_until_ready(out)

    # Pure-JAX f32 reference (eval-mode dropout == identity).  Kernel uses bf16
    # MXU inputs + bf16 output with f32 accumulation -> loosened tolerance.
    ref = jnp.maximum(x.reshape(-1, C) @ w1 + b1, 0.0) @ w2 + b2
    ref = ref.reshape(B, T, C)
    assert out.shape == (B, T, C)
    assert jnp.allclose(out, ref, atol=3e-2, rtol=3e-2), (
        float(jnp.max(jnp.abs(out - ref))))

    print("KERNEL_OK")
</pallas_src>

<mosaic_0001>
module attributes {stable_mosaic.version = 11 : i64} {
  func.func @ffn_kernel(%arg0: i32, %arg1: memref<16x72xf32, #tpu.memory_space<vmem>>, %arg2: memref<72x384xbf16, #tpu.memory_space<vmem>>, %arg3: memref<1x384xf32, #tpu.memory_space<vmem>>, %arg4: memref<384x128xbf16, #tpu.memory_space<vmem>>, %arg5: memref<1x128xf32, #tpu.memory_space<vmem>>, %arg6: memref<16x128xbf16, #tpu.memory_space<vmem>>) attributes {dimension_semantics = [#tpu.dimension_semantics<parallel>], iteration_bounds = array<i64: 1>, scalar_prefetch = 0 : i64, scratch_operands = 0 : i64, tpu.core_type = #tpu.core_type<tc>, window_params = [{transform_indices = @transform_0, window_bounds = array<i64: 16, 72>}, {pipeline_mode = #tpu.pipeline_mode<synchronous>, transform_indices = @transform_1, window_bounds = array<i64: 72, 384>}, {pipeline_mode = #tpu.pipeline_mode<synchronous>, transform_indices = @transform_2, window_bounds = array<i64: 1, 384>}, {pipeline_mode = #tpu.pipeline_mode<synchronous>, transform_indices = @transform_3, window_bounds = array<i64: 384, 128>}, {pipeline_mode = #tpu.pipeline_mode<synchronous>, transform_indices = @transform_4, window_bounds = array<i64: 1, 128>}, {transform_indices = @transform_5, window_bounds = array<i64: 16, 128>}]} {
    %c0 = arith.constant 0 : index
    %c0_0 = arith.constant 0 : index
    %0 = vector.load %arg1[%c0, %c0_0] : memref<16x72xf32, #tpu.memory_space<vmem>>, vector<16x72xf32>
    %1 = arith.truncf %0 : vector<16x72xf32> to vector<16x72xbf16>
    %c0_1 = arith.constant 0 : index
    %c0_2 = arith.constant 0 : index
    %2 = vector.load %arg2[%c0_1, %c0_2] : memref<72x384xbf16, #tpu.memory_space<vmem>>, vector<72x384xbf16>
    %cst = arith.constant dense<0.000000e+00> : vector<16x384xf32>
    %3 = tpu.matmul %1, %2, %cst {dimension_numbers = #tpu.dot_dimension_numbers<[1], [0], [0], [1], [0, 0, 1, 1], [], []>} : vector<16x72xbf16>, vector<72x384xbf16>, vector<16x384xf32> -> vector<16x384xf32>
    %c0_3 = arith.constant 0 : index
    %c0_4 = arith.constant 0 : index
    %4 = vector.load %arg3[%c0_3, %c0_4] : memref<1x384xf32, #tpu.memory_space<vmem>>, vector<1x384xf32>
    %5 = vector.broadcast %4 : vector<1x384xf32> to vector<16x384xf32>
    %6 = arith.addf %3, %5 : vector<16x384xf32>
    %cst_5 = arith.constant 0.000000e+00 : f32
    %7 = vector.broadcast %cst_5 : f32 to vector<16x384xf32>
    %8 = arith.maximumf %6, %7 : vector<16x384xf32>
    %9 = arith.truncf %8 : vector<16x384xf32> to vector<16x384xbf16>
    %c0_6 = arith.constant 0 : index
    %c0_7 = arith.constant 0 : index
    %10 = vector.load %arg4[%c0_6, %c0_7] : memref<384x128xbf16, #tpu.memory_space<vmem>>, vector<384x128xbf16>
    %cst_8 = arith.constant dense<0.000000e+00> : vector<16x128xf32>
    %11 = tpu.matmul %9, %10, %cst_8 {dimension_numbers = #tpu.dot_dimension_numbers<[1], [0], [0], [1], [0, 0, 1, 1], [], []>} : vector<16x384xbf16>, vector<384x128xbf16>, vector<16x128xf32> -> vector<16x128xf32>
    %c0_9 = arith.constant 0 : index
    %c0_10 = arith.constant 0 : index
    %12 = vector.load %arg5[%c0_9, %c0_10] : memref<1x128xf32, #tpu.memory_space<vmem>>, vector<1x128xf32>
    %13 = vector.broadcast %12 : vector<1x128xf32> to vector<16x128xf32>
    %14 = arith.addf %11, %13 : vector<16x128xf32>
    %15 = arith.truncf %14 : vector<16x128xf32> to vector<16x128xbf16>
    %c0_11 = arith.constant 0 : index
    %c0_12 = arith.constant 0 : index
    %16 = vector.load %arg6[%c0_11, %c0_12] : memref<16x128xbf16, #tpu.memory_space<vmem>>, vector<16x128xbf16>
    tpu.vector_store %arg6[%c0_11, %c0_12], %15 {strides = array<i32>} : memref<16x128xbf16, #tpu.memory_space<vmem>>, vector<16x128xbf16>,
    return
  }
  func.func @transform_0(%arg0: i32) -> (i32, i32) {
    %c0_i32 = arith.constant 0 : i32
    %c0_i32_0 = arith.constant 0 : i32
    return %arg0, %c0_i32 : i32, i32
  }
  func.func @transform_1(%arg0: i32) -> (i32, i32) {
    %c0_i32 = arith.constant 0 : i32
    %c0_i32_0 = arith.constant 0 : i32
    %c0_i32_1 = arith.constant 0 : i32
    return %c0_i32, %c0_i32_0 : i32, i32
  }
  func.func @transform_2(%arg0: i32) -> (i32, i32) {
    %c0_i32 = arith.constant 0 : i32
    %c0_i32_0 = arith.constant 0 : i32
    %c0_i32_1 = arith.constant 0 : i32
    return %c0_i32, %c0_i32_0 : i32, i32
  }
  func.func @transform_3(%arg0: i32) -> (i32, i32) {
    %c0_i32 = arith.constant 0 : i32
    %c0_i32_0 = arith.constant 0 : i32
    %c0_i32_1 = arith.constant 0 : i32
    return %c0_i32, %c0_i32_0 : i32, i32
  }
  func.func @transform_4(%arg0: i32) -> (i32, i32) {
    %c0_i32 = arith.constant 0 : i32
    %c0_i32_0 = arith.constant 0 : i32
    %c0_i32_1 = arith.constant 0 : i32
    return %c0_i32, %c0_i32_0 : i32, i32
  }
  func.func @transform_5(%arg0: i32) -> (i32, i32) {
    %c0_i32 = arith.constant 0 : i32
    %c0_i32_0 = arith.constant 0 : i32
    return %arg0, %c0_i32 : i32, i32
  }
}

</mosaic_0001>

<llo_original>
// kernel: tpu_custom_call.1
$region0: #{tpu_custom_call.1}
  #allocation0 [shape = 'u32[]', space=smem, size = 0x4, offset = 0x4, fixed_abs, tag = 'smem constant byte address 0x4 - core index']
  #allocation1 [shape = 'u32[144,128]{1,0:T(1,128)}', space=vmem, size = 0x12000, scoped, tag = 'internal scratch']
  %s0 = inlined_call_operand.hbm [shape: f32[16,72], index: 0, kind: input, shape index: {}]
  %s1 = inlined_call_operand.hbm [shape: bf16[72,384], index: 1, kind: input, shape index: {}]
  %s2 = inlined_call_operand.vmem [shape: f32[1,384], index: 2, kind: input, shape index: {}]
  %s3 = inlined_call_operand.hbm [shape: bf16[384,128], index: 3, kind: input, shape index: {}]
  %s4 = inlined_call_operand.vmem [shape: f32[1,128], index: 4, kind: input, shape index: {}]
  %s5 = inlined_call_operand.hbm [shape: bf16[16,128], index: 5, kind: output, shape index: {}]
  %s6 = sld [smem:[#allocation0]]
  $region42: #{tpu_custom_call.1} parent=0
    _
  %s8 = ssub.s32 1, %s6
  %s9 = scalar_select 0, %s8, %s6
  $region1: #{tpu_custom_call.1} parent=0
    #allocation2 [shape = 'u8[8192]{0}', space=vmem, size = 0x2000, scoped, tag = 'input window, operand 0, single buffered']
    #allocation3 [shape = 's32[1]{0}', space=sflag, size = 0x4, scoped, tag = 'scoped memory for tpu_custom_call.1']
    #allocation4 [shape = 's32[1]{0}', space=sflag, size = 0x4, scoped, tag = 'scoped memory for tpu_custom_call.1']
    #allocation5 [shape = 'u8[55296]{0}', space=vmem, size = 0xd800, scoped, tag = 'input window, operand 1, single buffered']
    #allocation6 [shape = 's32[1]{0}', space=sflag, size = 0x4, scoped, tag = 'scoped memory for tpu_custom_call.1']
    #allocation7 [shape = 'u8[98304]{0}', space=vmem, size = 0x18000, scoped, tag = 'input window, operand 3, single buffered']
    #allocation8 [shape = 'u8[4096]{0}', space=vmem, size = 0x1000, scoped, tag = 'output window, operand 0, single buffered']
    %10 = vsyncpa [#allocation3], 0
    %11 = vsyncpa [#allocation6], 0
    %12 = vsyncpa [#allocation4], 0
    // Predicated region
    $region2: #{tpu_custom_call.1} parent=1 // pred_check
      _
    $region3: #{tpu_custom_call.1} parent=1 // pred_check_branch
      %14 = sbr.rel (0) target = $region5
    $region4: #{tpu_custom_call.1} parent=1 // pred_region
      %s16 = ssub.s32 256, 256
      %17 = vsyncadd [#allocation3], %s16
      %s18 = sshll.u32 [#allocation2], 4
      %s19 = int_to_ptr.vmem [resolvable:$true] %s18
      %24 = dma.hbm_to_vmem [thread:$0]  %s0, 256, %s19, [#allocation3], 128, 128, 8
    $region5: #{tpu_custom_call.1} parent=1 // pred_fallthru
      _
    // Predicated region
    $region6: #{tpu_custom_call.1} parent=1 // pred_check
      _
    $region7: #{tpu_custom_call.1} parent=1 // pred_check_branch
      %26 = sbr.rel (0) target = $region9
    $region8: #{tpu_custom_call.1} parent=1 // pred_region
      %s28 = ssub.s32 1728, 1728
      %29 = vsyncadd [#allocation6], %s28
      %s30 = sshll.u32 [#allocation5], 4
      %s31 = int_to_ptr.vmem [resolvable:$true] %s30
      %36 = dma.hbm_to_vmem [thread:$0]  %s1, 1728, %s31, [#allocation6], 192, 192, 12
    $region9: #{tpu_custom_call.1} parent=1 // pred_fallthru
      _
    // Predicated region
    $region10: #{tpu_custom_call.1} parent=1 // pred_check
      _
    $region11: #{tpu_custom_call.1} parent=1 // pred_check_branch
      %38 = sbr.rel (0) target = $region13
    $region12: #{tpu_custom_call.1} parent=1 // pred_region
      _
    $region13: #{tpu_custom_call.1} parent=1 // pred_fallthru
      _
    // Predicated region
    $region14: #{tpu_custom_call.1} parent=1 // pred_check
      _
    $region15: #{tpu_custom_call.1} parent=1 // pred_check_branch
      %40 = sbr.rel (0) target = $region17
    $region16: #{tpu_custom_call.1} parent=1 // pred_region
      %s42 = ssub.s32 3072, 3072
      %43 = vsyncadd [#allocation6], %s42
      %s44 = sshll.u32 [#allocation7], 4
      %s45 = int_to_ptr.vmem [resolvable:$true] %s44
      %50 = dma.hbm_to_vmem [thread:$0]  %s3, 3072, %s45, [#allocation6], 64, 64, 4
    $region17: #{tpu_custom_call.1} parent=1 // pred_fallthru
      _
    // Predicated region
    $region18: #{tpu_custom_call.1} parent=1 // pred_check
      _
    $region19: #{tpu_custom_call.1} parent=1 // pred_check_branch
      %52 = sbr.rel (0) target = $region21
    $region20: #{tpu_custom_call.1} parent=1 // pred_region
      _
    $region21: #{tpu_custom_call.1} parent=1 // pred_fallthru
      _
    // Predicated region
    $region22: #{tpu_custom_call.1} parent=1 // pred_check
      _
    $region23: #{tpu_custom_call.1} parent=1 // pred_check_branch
      %54 = sbr.rel (0) target = $region25
    $region24: #{tpu_custom_call.1} parent=1 // pred_region
      %55 = dma.done [#allocation3], 256
    $region25: #{tpu_custom_call.1} parent=1 // pred_fallthru
      _
    // Predicated region
    $region26: #{tpu_custom_call.1} parent=1 // pred_check
      _
    $region27: #{tpu_custom_call.1} parent=1 // pred_check_branch
      %57 = sbr.rel (0) target = $region29
    $region28: #{tpu_custom_call.1} parent=1 // pred_region
      %58 = dma.done [#allocation6], 1728
    $region29: #{tpu_custom_call.1} parent=1 // pred_fallthru
      _
    // Predicated region
    $region30: #{tpu_custom_call.1} parent=1 // pred_check
      _
    $region31: #{tpu_custom_call.1} parent=1 // pred_check_branch
      %60 = sbr.rel (0) target = $region33
    $region32: #{tpu_custom_call.1} parent=1 // pred_region
      %61 = dma.done [#allocation6], 3072
    $region33: #{tpu_custom_call.1} parent=1 // pred_fallthru
      _
    %v63 = vld [vmem:[#allocation2] sm:$0xff]
    %v64 = vld [vmem:[#allocation2 + $0x8] sm:$0xff]
    %v65 = vpack.c.bf16 %v64, %v63
    %v66 = vld [vmem:[#allocation5] sm:$0xff]
    %v67 = vld [vmem:[#allocation5 + $0x8] sm:$0xf]
    %v68 = vld [vmem:[#allocation5 + $0xc] sm:$0xff]
    %v69 = vld [vmem:[#allocation5 + $0x14] sm:$0xf]
    %v70 = vld [vmem:[#allocation5 + $0x18] sm:$0xff]
    %v71 = vld [vmem:[#allocation5 + $0x20] sm:$0xf]
    %v72 = vld [vmem:[#allocation5 + $0x24] sm:$0xff]
    %v73 = vld [vmem:[#allocation5 + $0x2c] sm:$0xf]
    %v74 = vld [vmem:[#allocation5 + $0x30] sm:$0xff]
    %v75 = vld [vmem:[#allocation5 + $0x38] sm:$0xf]
    %v76 = vld [vmem:[#allocation5 + $0x3c] sm:$0xff]
    %v77 = vld [vmem:[#allocation5 + $0x44] sm:$0xf]
    %v78 = vld [vmem:[#allocation5 + $0x48] sm:$0xff]
    %v79 = vld [vmem:[#allocation5 + $0x50] sm:$0xf]
    %v80 = vld [vmem:[#allocation5 + $0x54] sm:$0xff]
    %v81 = vld [vmem:[#allocation5 + $0x5c] sm:$0xf]
    %v82 = vld [vmem:[#allocation5 + $0x60] sm:$0xff]
    %v83 = vld [vmem:[#allocation5 + $0x68] sm:$0xf]
    %v84 = vld [vmem:[%s2] sm:$0x7]
    %v86 = vlaneseq
    %v87 = vshrl.u32 %v86, 7
    %v88 = vsub.s32 0, %v87
    %v89 = vrot.slane %v84, %v88
    %v90 = vlaneseq
    %v91 = vshrl.u32 %v90, 7
    %v92 = vsub.s32 1, %v91
    %v93 = vrot.slane %v84, %v92
    %v94 = vlaneseq
    %v95 = vshrl.u32 %v94, 7
    %v96 = vsub.s32 2, %v95
    %v97 = vrot.slane %v84, %v96
    %v119 = vunpack.c.l.b16 %v66
    %v120 = vunpack.c.h.b16 %v66
    %v121 = vunpack.c.l.b16 %v67
    %v122 = vunpack.c.l.b16 %v68
    %v123 = vunpack.c.h.b16 %v68
    %v124 = vunpack.c.l.b16 %v69
    %v125 = vunpack.c.l.b16 %v70
    %v126 = vunpack.c.h.b16 %v70
    %v127 = vunpack.c.l.b16 %v71
    %v128 = vunpack.c.l.b16 %v72
    %v129 = vunpack.c.h.b16 %v72
    %v130 = vunpack.c.l.b16 %v73
    %v131 = vunpack.c.l.b16 %v74
    %v132 = vunpack.c.h.b16 %v74
    %v133 = vunpack.c.l.b16 %v75
    %v134 = vunpack.c.l.b16 %v76
    %v135 = vunpack.c.h.b16 %v76
    %v136 = vunpack.c.l.b16 %v77
    %v137 = vunpack.c.l.b16 %v78
    %v138 = vunpack.c.h.b16 %v78
    %v139 = vunpack.c.l.b16 %v79
    %v140 = vunpack.c.l.b16 %v80
    %v141 = vunpack.c.h.b16 %v80
    %v142 = vunpack.c.l.b16 %v81
    %v143 = vunpack.c.l.b16 %v82
    %v144 = vunpack.c.h.b16 %v82
    %v145 = vunpack.c.l.b16 %v83
    %v146 = vpack.c.b16 %v122, %v119
    %v147 = vpack.c.b16 %v123, %v120
    %v148 = vpack.c.b16 %v124, %v121
    %v149 = vpack.c.b16 %v128, %v125
    %v150 = vpack.c.b16 %v129, %v126
    %v151 = vpack.c.b16 %v130, %v127
    %v152 = vpack.c.b16 %v134, %v131
    %v153 = vpack.c.b16 %v135, %v132
    %v154 = vpack.c.b16 %v136, %v133
    %v155 = vpack.c.b16 %v140, %v137
    %v156 = vpack.c.b16 %v141, %v138
    %v157 = vpack.c.b16 %v142, %v139
    %v158 = vpack.c.b16 %v143, %v143
    %v159 = vpack.c.b16 %v144, %v144
    %v160 = vpack.c.b16 %v145, %v145
    %vm173 = vcmask 588800
    %v175 = vsel %vm173, %v65, 0
    %vm177 = vcmask 1043456
    %v179 = vsel %vm177, %v158, 0
    %v182 = vsel %vm177, %v159, 0
    %v185 = vsel %vm177, %v160, 0
    %187 = vmatprep.subr.bf16.mxu0 %v147
    %188 = vmatpush1.bf16.msra.mxu0 %v146
    %189 = vmatprep.subr.bf16.mxu0 %v150
    %190 = vmatpush1.bf16.msra.mxu0 %v149
    %191 = vmatprep.subr.bf16.mxu0 %v153
    %192 = vmatpush1.bf16.msra.mxu0 %v152
    %193 = vmatprep.subr.bf16.mxu0 %v156
    %194 = vmatpush1.bf16.msra.mxu0 %v155
    %195 = vmatprep.subr.bf16.mxu0 %v182
    %196 = vmatpush1.bf16.msra.mxu0 %v179
    %197 = vmatprep.subr.bf16.mxu0 0
    %198 = vmatpush1.bf16.msra.mxu0 0
    %199 = vmatprep.subr.bf16.mxu0 0
    %200 = vmatpush1.bf16.msra.mxu0 0
    %201 = vmatprep.subr.bf16.mxu0 0
    %202 = vmatpush1.bf16.msra.mxu0 0
    %203 = vmatprep.subr.bf16.mxu0 0
    %204 = vmatpush1.bf16.msra.mxu0 0
    %205 = vmatprep.subr.bf16.mxu0 0
    %206 = vmatpush1.bf16.msra.mxu0 0
    %207 = vmatprep.subr.bf16.mxu0 0
    %208 = vmatpush1.bf16.msra.mxu0 0
    %209 = vmatprep.subr.bf16.mxu0 0
    %210 = vmatpush1.bf16.msra.mxu0 0
    %211 = vmatprep.subr.bf16.mxu0 0
    %212 = vmatpush1.bf16.msra.mxu0 0
    %213 = vmatprep.subr.bf16.mxu0 0
    %214 = vmatpush1.bf16.msra.mxu0 0
    %215 = vmatprep.subr.bf16.mxu0 0
    %216 = vmatpush1.bf16.msra.mxu0 0
    %217 = vmatprep.subr.bf16.mxu0 0
    %218 = vmatpush1.bf16.msra.mxu0 0
    %219 = vmatprep.mubr.bf16.mxu0 0
    %220 = vmatmul.mubr.bf16.gmra.mrb[0].mxu0 %v175
    %v221 = vpop.f32.mrb[0].mxu0
    %v222 = vadd.f32 %v89, %v221
    %v223 = vpop.f32.mrb[0].mxu0
    %v224 = vadd.f32 %v93, %v223
    %v225 = vpop.f32.mrb[0].mxu0
    %v226 = vadd.f32 %v89, %v225
    %v227 = vpop.f32.mrb[0].mxu0
    %v228 = vadd.f32 %v93, %v227
    %229 = vdwg.mxu0
    %230 = vmatprep.subr.bf16.mxu0 0
    %231 = vmatpush1.bf16.msra.mxu0 %v148
    %232 = vmatprep.subr.bf16.mxu0 0
    %233 = vmatpush1.bf16.msra.mxu0 %v151
    %234 = vmatprep.subr.bf16.mxu0 0
    %235 = vmatpush1.bf16.msra.mxu0 %v154
    %236 = vmatprep.subr.bf16.mxu0 0
    %237 = vmatpush1.bf16.msra.mxu0 %v157
    %238 = vmatprep.subr.bf16.mxu0 0
    %239 = vmatpush1.bf16.msra.mxu0 %v185
    %240 = vmatprep.subr.bf16.mxu0 0
    %241 = vmatpush1.bf16.msra.mxu0 0
    %242 = vmatprep.subr.bf16.mxu0 0
    %243 = vmatpush1.bf16.msra.mxu0 0
    %244 = vmatprep.subr.bf16.mxu0 0
    %245 = vmatpush1.bf16.msra.mxu0 0
    %246 = vmatprep.subr.bf16.mxu0 0
    %247 = vmatpush1.bf16.msra.mxu0 0
    %248 = vmatprep.subr.bf16.mxu0 0
    %249 = vmatpush1.bf16.msra.mxu0 0
    %250 = vmatprep.subr.bf16.mxu0 0
    %251 = vmatpush1.bf16.msra.mxu0 0
    %252 = vmatprep.subr.bf16.mxu0 0
    %253 = vmatpush1.bf16.msra.mxu0 0
    %254 = vmatprep.subr.bf16.mxu0 0
    %255 = vmatpush1.bf16.msra.mxu0 0
    %256 = vmatprep.subr.bf16.mxu0 0
    %257 = vmatpush1.bf16.msra.mxu0 0
    %258 = vmatprep.subr.bf16.mxu0 0
    %259 = vmatpush1.bf16.msra.mxu0 0
    %260 = vmatprep.subr.bf16.mxu0 0
    %261 = vmatpush1.bf16.msra.mxu0 0
    %262 = vmatprep.mubr.bf16.mxu0 0
    %263 = vmatmul.mubr.bf16.gmra.mrb[0].mxu0 %v175
    %v264 = vpop.f32.mrb[0].mxu0
    %v265 = vadd.f32 %v97, %v264
    %v266 = vpop.f32.mrb[0].mxu0
    %v267 = vpop.f32.mrb[0].mxu0
    %v268 = vadd.f32 %v97, %v267
    %v269 = vpop.f32.mrb[0].mxu0
    %270 = vdwg.mxu0
    %v271 = vmax.f32 %v222, 0.0
    %v272 = vmax.f32 %v224, 0.0
    %v273 = vmax.f32 %v265, 0.0
    %v274 = vmax.f32 %v226, 0.0
    %v275 = vmax.f32 %v228, 0.0
    %v276 = vmax.f32 %v268, 0.0
    %v277 = vpack.c.bf16 %v274, %v271
    %v278 = vpack.c.bf16 %v275, %v272
    %v279 = vpack.c.bf16 %v276, %v273
    %v280 = vld [vmem:[#allocation7] sm:$0xf]
    %v281 = vld [vmem:[#allocation7 + $0x4] sm:$0xf]
    %v282 = vld [vmem:[#allocation7 + $0x8] sm:$0xf]
    %v283 = vld [vmem:[#allocation7 + $0xc] sm:$0xf]
    %v284 = vld [vmem:[#allocation7 + $0x10] sm:$0xf]
    %v285 = vld [vmem:[#allocation7 + $0x14] sm:$0xf]
    %v286 = vld [vmem:[#allocation7 + $0x18] sm:$0xf]
    %v287 = vld [vmem:[#allocation7 + $0x1c] sm:$0xf]
    %v288 = vld [vmem:[#allocation7 + $0x20] sm:$0xf]
    %v289 = vld [vmem:[#allocation7 + $0x24] sm:$0xf]
    %v290 = vld [vmem:[#allocation7 + $0x28] sm:$0xf]
    %v291 = vld [vmem:[#allocation7 + $0x2c] sm:$0xf]
    %v292 = vld [vmem:[#allocation7 + $0x30] sm:$0xf]
    %v293 = vld [vmem:[#allocation7 + $0x34] sm:$0xf]
    %v294 = vld [vmem:[#allocation7 + $0x38] sm:$0xf]
    %v295 = vld [vmem:[#allocation7 + $0x3c] sm:$0xf]
    %v296 = vld [vmem:[#allocation7 + $0x40] sm:$0xf]
    %v297 = vld [vmem:[#allocation7 + $0x44] sm:$0xf]
    %v298 = vld [vmem:[#allocation7 + $0x48] sm:$0xf]
    %v299 = vld [vmem:[#allocation7 + $0x4c] sm:$0xf]
    %v300 = vld [vmem:[#allocation7 + $0x50] sm:$0xf]
    %v301 = vld [vmem:[#allocation7 + $0x54] sm:$0xf]
    %v302 = vld [vmem:[#allocation7 + $0x58] sm:$0xf]
    %v303 = vld [vmem:[#allocation7 + $0x5c] sm:$0xf]
    %v304 = vld [vmem:[#allocation7 + $0x60] sm:$0xf]
    %v305 = vld [vmem:[#allocation7 + $0x64] sm:$0xf]
    %v306 = vld [vmem:[#allocation7 + $0x68] sm:$0xf]
    %v307 = vld [vmem:[#allocation7 + $0x6c] sm:$0xf]
    %v308 = vld [vmem:[#allocation7 + $0x70] sm:$0xf]
    %v309 = vld [vmem:[#allocation7 + $0x74] sm:$0xf]
    %v310 = vld [vmem:[#allocation7 + $0x78] sm:$0xf]
    %v311 = vld [vmem:[#allocation7 + $0x7c] sm:$0xf]
    %v312 = vld [vmem:[#allocation7 + $0x80] sm:$0xf]
    %v313 = vld [vmem:[#allocation7 + $0x84] sm:$0xf]
    %v314 = vld [vmem:[#allocation7 + $0x88] sm:$0xf]
    %v315 = vld [vmem:[#allocation7 + $0x8c] sm:$0xf]
    %v316 = vld [vmem:[#allocation7 + $0x90] sm:$0xf]
    %v317 = vld [vmem:[#allocation7 + $0x94] sm:$0xf]
    %v318 = vld [vmem:[#allocation7 + $0x98] sm:$0xf]
    %v319 = vld [vmem:[#allocation7 + $0x9c] sm:$0xf]
    %v320 = vld [vmem:[#allocation7 + $0xa0] sm:$0xf]
    %v321 = vld [vmem:[#allocation7 + $0xa4] sm:$0xf]
    %v322 = vld [vmem:[#allocation7 + $0xa8] sm:$0xf]
    %v323 = vld [vmem:[#allocation7 + $0xac] sm:$0xf]
    %v324 = vld [vmem:[#allocation7 + $0xb0] sm:$0xf]
    %v325 = vld [vmem:[#allocation7 + $0xb4] sm:$0xf]
    %v326 = vld [vmem:[#allocation7 + $0xb8] sm:$0xf]
    %v327 = vld [vmem:[#allocation7 + $0xbc] sm:$0xf]
    %v328 = vld [vmem:[%s4] sm:$0x1]
    %v330 = vlaneseq
    %v331 = vshrl.u32 %v330, 7
    %v332 = vsub.s32 0, %v331
    %v333 = vrot.slane %v328, %v332
    %v383 = vunpack.c.l.b16 %v280
    %v384 = vunpack.c.l.b16 %v281
    %v385 = vunpack.c.l.b16 %v282
    %v386 = vunpack.c.l.b16 %v283
    %v387 = vunpack.c.l.b16 %v284
    %v388 = vunpack.c.l.b16 %v285
    %v389 = vunpack.c.l.b16 %v286
    %v390 = vunpack.c.l.b16 %v287
    %v391 = vunpack.c.l.b16 %v288
    %v392 = vunpack.c.l.b16 %v289
    %v393 = vunpack.c.l.b16 %v290
    %v394 = vunpack.c.l.b16 %v291
    %v395 = vunpack.c.l.b16 %v292
    %v396 = vunpack.c.l.b16 %v293
    %v397 = vunpack.c.l.b16 %v294
    %v398 = vunpack.c.l.b16 %v295
    %v399 = vunpack.c.l.b16 %v296
    %v400 = vunpack.c.l.b16 %v297
    %v401 = vunpack.c.l.b16 %v298
    %v402 = vunpack.c.l.b16 %v299
    %v403 = vunpack.c.l.b16 %v300
    %v404 = vunpack.c.l.b16 %v301
    %v405 = vunpack.c.l.b16 %v302
    %v406 = vunpack.c.l.b16 %v303
    %v407 = vunpack.c.l.b16 %v304
    %v408 = vunpack.c.l.b16 %v305
    %v409 = vunpack.c.l.b16 %v306
    %v410 = vunpack.c.l.b16 %v307
    %v411 = vunpack.c.l.b16 %v308
    %v412 = vunpack.c.l.b16 %v309
    %v413 = vunpack.c.l.b16 %v310
    %v414 = vunpack.c.l.b16 %v311
    %v415 = vunpack.c.l.b16 %v312
    %v416 = vunpack.c.l.b16 %v313
    %v417 = vunpack.c.l.b16 %v314
    %v418 = vunpack.c.l.b16 %v315
    %v419 = vunpack.c.l.b16 %v316
    %v420 = vunpack.c.l.b16 %v317
    %v421 = vunpack.c.l.b16 %v318
    %v422 = vunpack.c.l.b16 %v319
    %v423 = vunpack.c.l.b16 %v320
    %v424 = vunpack.c.l.b16 %v321
    %v425 = vunpack.c.l.b16 %v322
    %v426 = vunpack.c.l.b16 %v323
    %v427 = vunpack.c.l.b16 %v324
    %v428 = vunpack.c.l.b16 %v325
    %v429 = vunpack.c.l.b16 %v326
    %v430 = vunpack.c.l.b16 %v327
    %v431 = vpack.c.b16 %v384, %v383
    %v432 = vpack.c.b16 %v386, %v385
    %v433 = vpack.c.b16 %v388, %v387
    %v434 = vpack.c.b16 %v390, %v389
    %v435 = vpack.c.b16 %v392, %v391
    %v436 = vpack.c.b16 %v394, %v393
    %v437 = vpack.c.b16 %v396, %v395
    %v438 = vpack.c.b16 %v398, %v397
    %v439 = vpack.c.b16 %v400, %v399
    %v440 = vpack.c.b16 %v402, %v401
    %v441 = vpack.c.b16 %v404, %v403
    %v442 = vpack.c.b16 %v406, %v405
    %v443 = vpack.c.b16 %v408, %v407
    %v444 = vpack.c.b16 %v410, %v409
    %v445 = vpack.c.b16 %v412, %v411
    %v446 = vpack.c.b16 %v414, %v413
    %v447 = vpack.c.b16 %v416, %v415
    %v448 = vpack.c.b16 %v418, %v417
    %v449 = vpack.c.b16 %v420, %v419
    %v450 = vpack.c.b16 %v422, %v421
    %v451 = vpack.c.b16 %v424, %v423
    %v452 = vpack.c.b16 %v426, %v425
    %v453 = vpack.c.b16 %v428, %v427
    %v454 = vpack.c.b16 %v430, %v429
    %479 = vmatprep.subr.bf16.mxu0 0
    %480 = vmatpush1.bf16.msra.mxu0 %v431
    %481 = vmatprep.subr.bf16.mxu0 0
    %482 = vmatpush1.bf16.msra.mxu0 %v432
    %483 = vmatprep.subr.bf16.mxu0 0
    %484 = vmatpush1.bf16.msra.mxu0 %v433
    %485 = vmatprep.subr.bf16.mxu0 0
    %486 = vmatpush1.bf16.msra.mxu0 %v434
    %487 = vmatprep.subr.bf16.mxu0 0
    %488 = vmatpush1.bf16.msra.mxu0 %v435
    %489 = vmatprep.subr.bf16.mxu0 0
    %490 = vmatpush1.bf16.msra.mxu0 %v436
    %491 = vmatprep.subr.bf16.mxu0 0
    %492 = vmatpush1.bf16.msra.mxu0 %v437
    %493 = vmatprep.subr.bf16.mxu0 0
    %494 = vmatpush1.bf16.msra.mxu0 %v438
    %495 = vmatprep.subr.bf16.mxu0 0
    %496 = vmatpush1.bf16.msra.mxu0 %v439
    %497 = vmatprep.subr.bf16.mxu0 0
    %498 = vmatpush1.bf16.msra.mxu0 %v440
    %499 = vmatprep.subr.bf16.mxu0 0
    %500 = vmatpush1.bf16.msra.mxu0 %v441
    %501 = vmatprep.subr.bf16.mxu0 0
    %502 = vmatpush1.bf16.msra.mxu0 %v442
    %503 = vmatprep.subr.bf16.mxu0 0
    %504 = vmatpush1.bf16.msra.mxu0 %v443
    %505 = vmatprep.subr.bf16.mxu0 0
    %506 = vmatpush1.bf16.msra.mxu0 %v444
    %507 = vmatprep.subr.bf16.mxu0 0
    %508 = vmatpush1.bf16.msra.mxu0 %v445
    %509 = vmatprep.subr.bf16.mxu0 0
    %510 = vmatpush1.bf16.msra.mxu0 %v446
    %511 = vmatprep.mubr.bf16.mxu0 %v278
    %512 = vmatmul.mubr.bf16.gmra.mrb[0].mxu0 %v277
    %v513 = vpop.f32.mrb[0].mxu0
    %v514 = vadd.f32 %v333, %v513
    %v515 = vpop.f32.mrb[0].mxu0
    %v516 = vpop.f32.mrb[0].mxu0
    %v517 = vadd.f32 %v333, %v516
    %v518 = vpop.f32.mrb[0].mxu0
    %519 = vdwg.mxu0
    %520 = vmatprep.subr.bf16.mxu0 0
    %521 = vmatpush1.bf16.msra.mxu0 %v447
    %522 = vmatprep.subr.bf16.mxu0 0
    %523 = vmatpush1.bf16.msra.mxu0 %v448
    %524 = vmatprep.subr.bf16.mxu0 0
    %525 = vmatpush1.bf16.msra.mxu0 %v449
    %526 = vmatprep.subr.bf16.mxu0 0
    %527 = vmatpush1.bf16.msra.mxu0 %v450
    %528 = vmatprep.subr.bf16.mxu0 0
    %529 = vmatpush1.bf16.msra.mxu0 %v451
    %530 = vmatprep.subr.bf16.mxu0 0
    %531 = vmatpush1.bf16.msra.mxu0 %v452
    %532 = vmatprep.subr.bf16.mxu0 0
    %533 = vmatpush1.bf16.msra.mxu0 %v453
    %534 = vmatprep.subr.bf16.mxu0 0
    %535 = vmatpush1.bf16.msra.mxu0 %v454
    %536 = vmatprep.subr.bf16.mxu0 0
    %537 = vmatpush1.bf16.msra.mxu0 0
    %538 = vmatprep.subr.bf16.mxu0 0
    %539 = vmatpush1.bf16.msra.mxu0 0
    %540 = vmatprep.subr.bf16.mxu0 0
    %541 = vmatpush1.bf16.msra.mxu0 0
    %542 = vmatprep.subr.bf16.mxu0 0
    %543 = vmatpush1.bf16.msra.mxu0 0
    %544 = vmatprep.subr.bf16.mxu0 0
    %545 = vmatpush1.bf16.msra.mxu0 0
    %546 = vmatprep.subr.bf16.mxu0 0
    %547 = vmatpush1.bf16.msra.mxu0 0
    %548 = vmatprep.subr.bf16.mxu0 0
    %549 = vmatpush1.bf16.msra.mxu0 0
    %550 = vmatprep.subr.bf16.mxu0 0
    %551 = vmatpush1.bf16.msra.mxu0 0
    %552 = vmatprep.mubr.bf16.mxu0 0
    %553 = vmatmul.mubr.bf16.gmra.mrb[0].mxu0 %v279
    %v554 = vpop.f32.mrb[0].mxu0
    %v555 = vadd.f32 %v514, %v554
    %v556 = vpop.f32.mrb[0].mxu0
    %v557 = vpop.f32.mrb[0].mxu0
    %v558 = vadd.f32 %v517, %v557
    %v559 = vpop.f32.mrb[0].mxu0
    %560 = vdwg.mxu0
    %v561 = vpack.c.bf16 %v558, %v555
    %v563 = vunpack.c.l.b16 %v561
    %v564 = vunpack.c.h.b16 %v561
    %v565 = vpack.c.b16 %v563, %v563
    %v566 = vpack.c.b16 %v564, %v564
    %569 = vst [vmem:[#allocation8] sm:$0xf] %v565
    %570 = vst [vmem:[#allocation8 + $0x4] sm:$0xf] %v566
    // Predicated region
    $region34: #{tpu_custom_call.1} parent=1 // pred_check
      _
    $region35: #{tpu_custom_call.1} parent=1 // pred_check_branch
      %572 = sbr.rel (0) target = $region37
    $region36: #{tpu_custom_call.1} parent=1 // pred_region
      %s574 = ssub.s32 128, 128
      %575 = vsyncadd [#allocation4], %s574
      %s576 = sshll.u32 [#allocation8], 4
      %s577 = int_to_ptr.vmem [resolvable:$true] %s576
      %582 = dma.vmem_to_hbm [thread:$0]  %s577, 128, %s5, [#allocation4], 64, 64, 4
    $region37: #{tpu_custom_call.1} parent=1 // pred_fallthru
      _
    // Predicated region
    $region38: #{tpu_custom_call.1} parent=1 // pred_check
      _
    $region39: #{tpu_custom_call.1} parent=1 // pred_check_branch
      %584 = sbr.rel (0) target = $region41
    $region40: #{tpu_custom_call.1} parent=1 // pred_region
      %585 = dma.done [#allocation4], 128
    $region41: #{tpu_custom_call.1} parent=1 // pred_fallthru
      _
    %586 = vsyncpa [#allocation3], 1
    %587 = vsyncpa [#allocation6], 1
    %588 = vsyncpa [#allocation4], 1

</llo_original>
